<compile_context>
chip_gen: v6e
topology: v6e:2x2x1
jax: 0.10.0
libtpu: 0.0.40
codegen_flags: <defaults>
</compile_context>

<pallas_src>
import functools

import jax
import jax.numpy as jnp
from jax.experimental import pallas as pl
from jax.experimental.pallas import tpu as pltpu

LANES = 128
MAX_TILE_ROWS = 4096   # (4096,128) f32 = 2 MiB / input / pipeline buffer


def _round_up(x, m):
    return (x + m - 1) // m * m


def _sublane_granule(dtype):
    # Minimum sublane multiple for a legal (rows, 128) block of this dtype.
    return {4: 8, 2: 16, 1: 32}.get(jnp.dtype(dtype).itemsize, 8)


def _nbce_elem(x, t):
    # Shared elementwise math (used in-kernel and for the tiny ragged tail).
    ax = jnp.abs(x)
    s = jnp.log1p(jnp.exp(-ax))                # softplus(-|x|)
    bce = jnp.maximum(x, 0.0) - x * t + s      # BCEWithLogits (torch stable form)
    denorm = ax + 2.0 * s                      # -log(sigmoid(x)*(1-sigmoid(x)))
    return bce / denorm


def _nbce_kernel(p_ref, t_ref, out_ref, *, tile_rows, rows_in_last, needs_mask):
    j = pl.program_id(0)   # streaming reduction over row tiles ("arbitrary")

    @pl.when(j == 0)
    def _():
        out_ref[...] = jnp.zeros_like(out_ref)

    x = p_ref[...].astype(jnp.float32)
    t = t_ref[...].astype(jnp.float32)
    ratio = _nbce_elem(x, t)                   # (tile_rows, LANES)

    def fold(v):
        # Pure-VPU partial reduce: sum the tile's (8,128) vregs into one vreg.
        # The reshape splits rows on an 8-row boundary, so it stays a view.
        return v.reshape(tile_rows // 8, 8, LANES).sum(axis=0)

    if needs_mask:
        # Only the globally-last tile is a partial boundary block; its rows
        # beyond `rows_in_last` hold unspecified data (possibly NaN/Inf), so
        # mask with a select (never multiply-by-zero).
        is_last = j == pl.num_programs(0) - 1

        @pl.when(is_last)
        def _():
            row = jax.lax.broadcasted_iota(jnp.int32, ratio.shape, 0)
            out_ref[...] += fold(jnp.where(row < rows_in_last, ratio, 0.0))

        @pl.when(jnp.logical_not(is_last))
        def _():
            out_ref[...] += fold(ratio)
    else:
        out_ref[...] += fold(ratio)


@jax.jit
def normalized_bce_loss(preds, targets):
    assert preds.shape == targets.shape
    n = preds.size

    flat_p = preds.reshape(-1)
    flat_t = targets.reshape(-1)

    tail = n % LANES            # ragged <128-element remainder
    n_main = n - tail
    rows = n_main // LANES

    total = jnp.float32(0.0)

    if rows > 0:
        # 128-aligned prefix: a free reshape when tail == 0 (no HBM copy).
        p2 = (flat_p if tail == 0 else flat_p[:n_main]).reshape(rows, LANES)
        t2 = (flat_t if tail == 0 else flat_t[:n_main]).reshape(rows, LANES)

        granule = max(_sublane_granule(preds.dtype),
                      _sublane_granule(targets.dtype))
        tile_rows = min(MAX_TILE_ROWS, _round_up(rows, granule))
        inner_tiles = (rows + tile_rows - 1) // tile_rows
        rows_in_last = rows - (inner_tiles - 1) * tile_rows
        needs_mask = rows_in_last != tile_rows

        kernel = functools.partial(
            _nbce_kernel,
            tile_rows=tile_rows,
            rows_in_last=rows_in_last,
            needs_mask=needs_mask,
        )

        in_spec = pl.BlockSpec((tile_rows, LANES), lambda j: (j, 0))

        partials = pl.pallas_call(
            kernel,
            out_shape=jax.ShapeDtypeStruct((8, LANES), jnp.float32),
            grid_spec=pltpu.PrefetchScalarGridSpec(
                num_scalar_prefetch=0,
                grid=(inner_tiles,),
                in_specs=[in_spec, in_spec],
                # Resident accumulator block across the whole reduction axis.
                out_specs=pl.BlockSpec((8, LANES), lambda j: (0, 0)),
            ),
            compiler_params=pltpu.CompilerParams(
                dimension_semantics=("arbitrary",),
            ),
        )(p2, t2)

        total = total + jnp.sum(partials)

    if tail:
        # Tiny (<128 elem) tail folded in the wrapper; avoids any full-array pad.
        total = total + jnp.sum(
            _nbce_elem(flat_p[n_main:].astype(jnp.float32),
                       flat_t[n_main:].astype(jnp.float32)))

    return total / jnp.float32(n)


def _reference(preds, targets):
    # Naive formula matching the PyTorch module literally.
    x = preds.astype(jnp.float32)
    t = targets.astype(jnp.float32)
    bce = jnp.maximum(x, 0.0) - x * t + jnp.log1p(jnp.exp(-jnp.abs(x)))
    sig = jax.nn.sigmoid(x)
    denorm = -jnp.log(sig * (1.0 - sig))
    return jnp.mean(bce / denorm)


if __name__ == "__main__":
    key = jax.random.PRNGKey(0)
    k1, k2 = jax.random.split(key)
    # NCHW, small shapes: batch=2, channels=4, spatial=16x16
    preds = jax.random.normal(k1, (2, 4, 16, 16), dtype=jnp.float32) * 2.0
    targets = (jax.random.uniform(k2, (2, 4, 16, 16)) > 0.5).astype(jnp.float32)

    loss = normalized_bce_loss(preds, targets)
    jax.block_until_ready(loss)

    ref = _reference(preds, targets)
    assert jnp.allclose(loss, ref, rtol=1e-5, atol=1e-6), (loss, ref)
    print("KERNEL_OK")
</pallas_src>

<mosaic_0001>
module attributes {stable_mosaic.version = 11 : i64} {
  func.func @_nbce_kernel(%arg0: i32, %arg1: memref<16x128xf32, #tpu.memory_space<vmem>>, %arg2: memref<16x128xf32, #tpu.memory_space<vmem>>, %arg3: memref<8x128xf32, #tpu.memory_space<vmem>>) attributes {dimension_semantics = [#tpu.dimension_semantics<arbitrary>], iteration_bounds = array<i64: 1>, scalar_prefetch = 0 : i64, scratch_operands = 0 : i64, tpu.core_type = #tpu.core_type<tc>, window_params = [{transform_indices = @transform_0, window_bounds = array<i64: 16, 128>}, {transform_indices = @transform_1, window_bounds = array<i64: 16, 128>}, {pipeline_mode = #tpu.pipeline_mode<synchronous>, transform_indices = @transform_2, window_bounds = array<i64: 8, 128>}]} {
    %c0_i32 = arith.constant 0 : i32
    %0 = arith.cmpi eq, %arg0, %c0_i32 : i32
    %1 = arith.extui %0 : i1 to i32
    %c0_i32_0 = arith.constant 0 : i32
    %2 = arith.cmpi ne, %1, %c0_i32_0 : i32
    scf.if %2 {
      %cst_11 = arith.constant 0.000000e+00 : f32
      %24 = vector.broadcast %cst_11 : f32 to vector<8x128xf32>
      %c0_12 = arith.constant 0 : index
      %c0_13 = arith.constant 0 : index
      %25 = vector.load %arg3[%c0_12, %c0_13] : memref<8x128xf32, #tpu.memory_space<vmem>>, vector<8x128xf32>
      tpu.vector_store %arg3[%c0_12, %c0_13], %24 {strides = array<i32>} : memref<8x128xf32, #tpu.memory_space<vmem>>, vector<8x128xf32>,
    } else {
    }
    %c0 = arith.constant 0 : index
    %c0_1 = arith.constant 0 : index
    %3 = vector.load %arg1[%c0, %c0_1] : memref<16x128xf32, #tpu.memory_space<vmem>>, vector<16x128xf32>
    %c0_2 = arith.constant 0 : index
    %c0_3 = arith.constant 0 : index
    %4 = vector.load %arg2[%c0_2, %c0_3] : memref<16x128xf32, #tpu.memory_space<vmem>>, vector<16x128xf32>
    %5 = math.absf %3 : vector<16x128xf32>
    %cst = arith.constant 0.000000e+00 : f32
    %6 = vector.broadcast %cst : f32 to vector<16x128xf32>
    %7 = arith.subf %6, %5 : vector<16x128xf32>
    %8 = math.exp %7 : vector<16x128xf32>
    %9 = math.log1p %8 : vector<16x128xf32>
    %cst_4 = arith.constant 0.000000e+00 : f32
    %10 = vector.broadcast %cst_4 : f32 to vector<16x128xf32>
    %11 = arith.maximumf %3, %10 : vector<16x128xf32>
    %12 = arith.mulf %3, %4 : vector<16x128xf32>
    %13 = arith.subf %11, %12 : vector<16x128xf32>
    %14 = arith.addf %13, %9 : vector<16x128xf32>
    %cst_5 = arith.constant 2.000000e+00 : f32
    %15 = vector.broadcast %cst_5 : f32 to vector<16x128xf32>
    %16 = arith.mulf %15, %9 : vector<16x128xf32>
    %17 = arith.addf %5, %16 : vector<16x128xf32>
    %18 = arith.divf %14, %17 : vector<16x128xf32>
    %c0_6 = arith.constant 0 : index
    %c0_7 = arith.constant 0 : index
    %19 = vector.load %arg3[%c0_6, %c0_7] : memref<8x128xf32, #tpu.memory_space<vmem>>, vector<8x128xf32>
    %20 = vector.shape_cast %18 : vector<16x128xf32> to vector<2x8x128xf32>
    %cst_8 = arith.constant dense<0.000000e+00> : vector<8x128xf32>
    %21 = vector.multi_reduction <add>, %20, %cst_8 [0] : vector<2x8x128xf32> to vector<8x128xf32>
    %22 = arith.addf %19, %21 : vector<8x128xf32>
    %c0_9 = arith.constant 0 : index
    %c0_10 = arith.constant 0 : index
    %23 = vector.load %arg3[%c0_9, %c0_10] : memref<8x128xf32, #tpu.memory_space<vmem>>, vector<8x128xf32>
    tpu.vector_store %arg3[%c0_9, %c0_10], %22 {strides = array<i32>} : memref<8x128xf32, #tpu.memory_space<vmem>>, vector<8x128xf32>,
    return
  }
  func.func @transform_0(%arg0: i32) -> (i32, i32) {
    %c0_i32 = arith.constant 0 : i32
    %c0_i32_0 = arith.constant 0 : i32
    return %arg0, %c0_i32 : i32, i32
  }
  func.func @transform_1(%arg0: i32) -> (i32, i32) {
    %c0_i32 = arith.constant 0 : i32
    %c0_i32_0 = arith.constant 0 : i32
    return %arg0, %c0_i32 : i32, i32
  }
  func.func @transform_2(%arg0: i32) -> (i32, i32) {
    %c0_i32 = arith.constant 0 : i32
    %c0_i32_0 = arith.constant 0 : i32
    %c0_i32_1 = arith.constant 0 : i32
    return %c0_i32, %c0_i32_0 : i32, i32
  }
}

</mosaic_0001>

<llo_original>
// kernel: normalized_bce_loss.1
$region0: #{normalized_bce_loss.1}
  #allocation0 [shape = 'u32[]', space=smem, size = 0x4, offset = 0x4, fixed_abs, tag = 'smem constant byte address 0x4 - core index']
  #allocation1 [shape = 'u32[144,128]{1,0:T(1,128)}', space=vmem, size = 0x12000, scoped, tag = 'internal scratch']
  %s0 = inlined_call_operand.vmem [shape: f32[16,128], index: 0, kind: input, shape index: {}]
  %s1 = inlined_call_operand.vmem [shape: f32[16,128], index: 1, kind: input, shape index: {}]
  %s2 = inlined_call_operand.vmem [shape: f32[8,128], index: 2, kind: output, shape index: {}]
  %s3 = sld [smem:[#allocation0]]
  $region22: #{normalized_bce_loss.1} parent=0
    _
  %s5 = ssub.s32 1, %s3
  %s6 = scalar_select 0, %s5, %s3
  // Predicated region
  $region2: #{normalized_bce_loss.1} parent=0 // pred_check
    _
  $region3: #{normalized_bce_loss.1} parent=0 // pred_check_branch
    %8 = sbr.rel (0) target = $region5
  $region4: #{normalized_bce_loss.1} parent=0 // pred_region
    _
  $region5: #{normalized_bce_loss.1} parent=0 // pred_fallthru
    _
  // Predicated region
  $region6: #{normalized_bce_loss.1} parent=0 // pred_check
    _
  $region7: #{normalized_bce_loss.1} parent=0 // pred_check_branch
    %10 = sbr.rel (0) target = $region9
  $region8: #{normalized_bce_loss.1} parent=0 // pred_region
    _
  $region9: #{normalized_bce_loss.1} parent=0 // pred_fallthru
    _
  %p11 = scmp.eq.s32.totalorder 0, 0
  // Predicated region
  $region10: #{normalized_bce_loss.1} parent=0 // pred_check
    %p12 = pneg %p11
  $region11: #{normalized_bce_loss.1} parent=0 // pred_check_branch
    %14 = sbr.rel (%p12) target = $region13
  $region12: #{normalized_bce_loss.1} parent=0 // pred_region
    %15 = vst [vmem:[%s2] sm:$0xff] 0.0
  $region13: #{normalized_bce_loss.1} parent=0 // pred_fallthru
    _
  %v16 = vld [vmem:[%s0] sm:$0xff]
  %v17 = vld [vmem:[%s0 + $0x8] sm:$0xff]
  %v18 = vld [vmem:[%s1] sm:$0xff]
  %v19 = vld [vmem:[%s1 + $0x8] sm:$0xff]
  %v20 = vand.u32 2147483647, %v16
  %v21 = vand.u32 2147483647, %v17
  %v22 = vsub.f32 0.0, %v20
  %v23 = vsub.f32 0.0, %v21
  %v24 = vmul.f32 %v22, 1.442695
  %v25 = vpow.pop %v24
  %v26 = vmul.f32 %v23, 1.442695
  %v27 = vpow.pop %v26
  %v28 = vadd.f32 %v25, 1.0
  %v29 = vlog2.pop %v28
  %v30 = vmul.f32 %v29, 0.6931472
  %v31 = vmul.f32 -0.5, %v25
  %v32 = vadd.f32 %v31, 1.0
  %v33 = vmul.f32 %v32, %v25
  %v34 = vand.u32 2147483647, %v25
  %vm35 = vcmp.lt.f32.partialorder %v34, 0.0004427343
  %v36 = vsel %vm35, %v33, %v30
  %v37 = vadd.f32 %v27, 1.0
  %v38 = vlog2.pop %v37
  %v39 = vmul.f32 %v38, 0.6931472
  %v40 = vmul.f32 -0.5, %v27
  %v41 = vadd.f32 %v40, 1.0
  %v42 = vmul.f32 %v41, %v27
  %v43 = vand.u32 2147483647, %v27
  %vm44 = vcmp.lt.f32.partialorder %v43, 0.0004427343
  %v45 = vsel %vm44, %v42, %v39
  %v46 = vmax.f32 %v16, 0.0
  %v47 = vmax.f32 %v17, 0.0
  %v48 = vmul.f32 %v16, %v18
  %v49 = vmul.f32 %v17, %v19
  %v50 = vsub.f32 %v46, %v48
  %v51 = vsub.f32 %v47, %v49
  %v52 = vadd.f32 %v50, %v36
  %v53 = vadd.f32 %v51, %v45
  %v54 = vmul.f32 %v36, 2.0
  %v55 = vmul.f32 %v45, 2.0
  %v56 = vadd.f32 %v20, %v54
  %v57 = vadd.f32 %v21, %v55
  %v58 = vrcp.pop %v56
  %v59 = vmul.f32 %v52, %v58
  %v60 = vrcp.pop %v57
  %v61 = vmul.f32 %v53, %v60
  %v62 = vld [vmem:[%s2] sm:$0xff]
  %v63 = vadd.f32 %v59, %v61
  %v64 = vadd.f32 %v62, %v63
  %65 = vst [vmem:[%s2] sm:$0xff] %v64
  // Predicated region
  $region14: #{normalized_bce_loss.1} parent=0 // pred_check
    _
  $region15: #{normalized_bce_loss.1} parent=0 // pred_check_branch
    %67 = sbr.rel (0) target = $region17
  $region16: #{normalized_bce_loss.1} parent=0 // pred_region
    _
  $region17: #{normalized_bce_loss.1} parent=0 // pred_fallthru
    _
  // Predicated region
  $region18: #{normalized_bce_loss.1} parent=0 // pred_check
    _
  $region19: #{normalized_bce_loss.1} parent=0 // pred_check_branch
    %69 = sbr.rel (0) target = $region21
  $region20: #{normalized_bce_loss.1} parent=0 // pred_region
    _
  $region21: #{normalized_bce_loss.1} parent=0 // pred_fallthru
    _

</llo_original>
